<compile_context>
chip_gen: v7x
topology: tpu7x:2x2x1
jax: 0.10.0
libtpu: 0.0.40
codegen_flags: <defaults>
</compile_context>

<pallas_src>
import jax
import jax.numpy as jnp
from jax.experimental import pallas as pl
from jax.experimental.pallas import tpu as pltpu

_LANE = 128
_MAX_BLOCK_ROWS = 1024      # (1024,128) f32 tile = 512 KiB; 2 inputs x 2 bufs = 2 MiB
_SENTINEL = -1e4            # pad logit: sigmoid -> 0 and bce(x, t=0) -> 0 exactly


def _partials_kernel(x_ref, t_ref, o_ref):
    """Accumulate per-batch partial sums into a resident (1,5,8,128) block.

    Slot layout along axis 1 of o_ref:
      0: sum(bce)   1: sum(t*bce)   2: sum(sigmoid(x)*t)
      3: sum(sigmoid(x))            4: sum(t)
    """
    @pl.when(pl.program_id(1) == 0)
    def _init():
        o_ref[...] = jnp.zeros_like(o_ref)

    x = x_ref[0].astype(jnp.float32)        # (BR, 128), cast on load
    t = t_ref[0].astype(jnp.float32)

    # Share one exp() between the stable sigmoid and the stable BCE term.
    e = jnp.exp(-jnp.abs(x))                                  # EUP
    sig = jnp.where(x >= 0.0, 1.0, e) / (1.0 + e)             # stable sigmoid
    bce = jnp.maximum(x, 0.0) - x * t + jnp.log1p(e)          # stable BCE w/ logits

    br = x.shape[0]

    def fold(v):  # (BR,128) -> (8,128) vector partial; pure VPU add tree
        return v.reshape(br // 8, 8, _LANE).sum(axis=0)

    o_ref[0, 0] = o_ref[0, 0] + fold(bce)
    o_ref[0, 1] = o_ref[0, 1] + fold(t * bce)
    o_ref[0, 2] = o_ref[0, 2] + fold(sig * t)
    o_ref[0, 3] = o_ref[0, 3] + fold(sig)
    o_ref[0, 4] = o_ref[0, 4] + fold(t)


def weighted_bce_dice_loss(inp, output, target):
    """0.5 * weighted_bce(output, target) + dice(output, target)."""
    del inp  # unused, mirroring the PyTorch module's forward signature

    B = output.shape[0]
    L = 1
    for d in output.shape[1:]:
        L *= d

    x2 = output.reshape(B, L)          # keep native dtype; cast inside kernel
    t2 = target.reshape(B, L)

    rows = -(-L // _LANE)
    if rows <= _MAX_BLOCK_ROWS:
        block_rows = ((rows + 15) // 16) * 16     # sublane-aligned (also bf16-safe)
    else:
        block_rows = _MAX_BLOCK_ROWS
    rows_pad = ((rows + block_rows - 1) // block_rows) * block_rows
    pad = rows_pad * _LANE - L
    if pad:
        x2 = jnp.pad(x2, ((0, 0), (0, pad)), constant_values=_SENTINEL)
        t2 = jnp.pad(t2, ((0, 0), (0, pad)))
    x3 = x2.reshape(B, rows_pad, _LANE)
    t3 = t2.reshape(B, rows_pad, _LANE)

    num_chunks = rows_pad // block_rows

    partials = pl.pallas_call(
        _partials_kernel,
        out_shape=jax.ShapeDtypeStruct((B, 5, 8, _LANE), jnp.float32),
        grid_spec=pltpu.PrefetchScalarGridSpec(
            num_scalar_prefetch=0,
            grid=(B, num_chunks),
            in_specs=[
                pl.BlockSpec((1, block_rows, _LANE), lambda b, i: (b, i, 0)),
                pl.BlockSpec((1, block_rows, _LANE), lambda b, i: (b, i, 0)),
            ],
            out_specs=pl.BlockSpec((1, 5, 8, _LANE), lambda b, i: (b, 0, 0, 0)),
        ),
        compiler_params=pltpu.CompilerParams(
            dimension_semantics=("parallel", "arbitrary")),
    )(x3, t3)

    # Tiny epilogue in plain JAX: (B,5,8,128) -> (B,5) -> scalar loss.
    sums = jnp.sum(partials, axis=(2, 3))
    s_bce, s_tbce, s_inter, s_sig, s_tgt = (sums[:, q] for q in range(5))

    n = jnp.float32(B * L)
    unweighted_bce = jnp.sum(s_bce) / n
    disease_loss = jnp.sum(s_tbce) / n
    sum_t = jnp.sum(s_tgt)
    ratio = (n - sum_t) / sum_t                    # sum(1 - t) / sum(t)
    weighted_bce = unweighted_bce + (ratio - 1.0) * disease_loss

    smooth = 1e-5
    dice_coef = (2.0 * s_inter + smooth) / (s_sig + s_tgt + smooth)
    dice = 1.0 - jnp.sum(dice_coef) / B

    return 0.5 * weighted_bce + dice


def _reference(output, target):
    """Pure-JAX transcription of the PyTorch WeightedBCEDiceLoss.forward."""
    x = output.astype(jnp.float32)
    t = target.astype(jnp.float32)

    bce = jnp.maximum(x, 0.0) - x * t + jnp.log1p(jnp.exp(-jnp.abs(x)))
    unweighted_bce = jnp.mean(bce)
    disease_loss = jnp.mean(t * bce)
    ratio = jnp.sum(1.0 - t) / jnp.sum(t)
    weighted_bce = unweighted_bce + (ratio - 1.0) * disease_loss

    sig = jax.nn.sigmoid(x)
    B = x.shape[0]
    o = sig.reshape(B, -1)
    tt = t.reshape(B, -1)
    smooth = 1e-5
    dice_coef = (2.0 * jnp.sum(o * tt, axis=1) + smooth) / (
        jnp.sum(o, axis=1) + jnp.sum(tt, axis=1) + smooth)
    dice = 1.0 - jnp.sum(dice_coef) / B

    return 0.5 * weighted_bce + dice


if __name__ == "__main__":
    key = jax.random.PRNGKey(0)
    k0, k1, k2 = jax.random.split(key, 3)

    # Small NCHW-shaped tensors consistent with a segmentation loss.
    shape = (2, 4, 16, 16)
    inp = jax.random.normal(k0, shape, dtype=jnp.float32)       # ignored
    output = jax.random.normal(k1, shape, dtype=jnp.float32)    # logits
    target = jax.random.uniform(k2, shape, dtype=jnp.float32)   # targets in [0,1]

    loss_fn = jax.jit(weighted_bce_dice_loss)
    result = loss_fn(inp, output, target)
    result = jax.block_until_ready(result)

    ref = _reference(output, target)
    assert jnp.allclose(result, ref, rtol=1e-4, atol=1e-4), (result, ref)

    print("KERNEL_OK")
</pallas_src>

<mosaic_0001>
module attributes {stable_mosaic.version = 11 : i64} {
  func.func @_partials_kernel(%arg0: i32, %arg1: i32, %arg2: memref<1x16x128xf32, #tpu.memory_space<vmem>>, %arg3: memref<1x16x128xf32, #tpu.memory_space<vmem>>, %arg4: memref<1x5x8x128xf32, #tpu.memory_space<vmem>>) attributes {dimension_semantics = [#tpu.dimension_semantics<parallel>, #tpu.dimension_semantics<arbitrary>], iteration_bounds = array<i64: 2, 1>, scalar_prefetch = 0 : i64, scratch_operands = 0 : i64, tpu.core_type = #tpu.core_type<tc>, window_params = [{transform_indices = @transform_0, window_bounds = array<i64: 1, 16, 128>}, {transform_indices = @transform_1, window_bounds = array<i64: 1, 16, 128>}, {transform_indices = @transform_2, window_bounds = array<i64: 1, 5, 8, 128>}]} {
    %c0_i32 = arith.constant 0 : i32
    %0 = arith.cmpi eq, %arg1, %c0_i32 : i32
    %1 = arith.extui %0 : i1 to i32
    %c0_i32_0 = arith.constant 0 : i32
    %2 = arith.cmpi ne, %1, %c0_i32_0 : i32
    scf.if %2 {
      %cst_51 = arith.constant 0.000000e+00 : f32
      %66 = vector.broadcast %cst_51 : f32 to vector<1x5x8x128xf32>
      %c0_52 = arith.constant 0 : index
      %c0_53 = arith.constant 0 : index
      %c0_54 = arith.constant 0 : index
      %c0_55 = arith.constant 0 : index
      %67 = vector.load %arg4[%c0_52, %c0_53, %c0_54, %c0_55] : memref<1x5x8x128xf32, #tpu.memory_space<vmem>>, vector<1x5x8x128xf32>
      tpu.vector_store %arg4[%c0_52, %c0_53, %c0_54, %c0_55], %66 {strides = array<i32>} : memref<1x5x8x128xf32, #tpu.memory_space<vmem>>, vector<1x5x8x128xf32>,
    } else {
    }
    %c0 = arith.constant 0 : index
    %c0_1 = arith.constant 0 : index
    %c0_2 = arith.constant 0 : index
    %3 = vector.load %arg2[%c0, %c0_1, %c0_2] : memref<1x16x128xf32, #tpu.memory_space<vmem>>, vector<1x16x128xf32>
    %4 = vector.shape_cast %3 : vector<1x16x128xf32> to vector<16x128xf32>
    %c0_3 = arith.constant 0 : index
    %c0_4 = arith.constant 0 : index
    %c0_5 = arith.constant 0 : index
    %5 = vector.load %arg3[%c0_3, %c0_4, %c0_5] : memref<1x16x128xf32, #tpu.memory_space<vmem>>, vector<1x16x128xf32>
    %6 = vector.shape_cast %5 : vector<1x16x128xf32> to vector<16x128xf32>
    %7 = math.absf %4 : vector<16x128xf32>
    %cst = arith.constant 0.000000e+00 : f32
    %8 = vector.broadcast %cst : f32 to vector<16x128xf32>
    %9 = arith.subf %8, %7 : vector<16x128xf32>
    %10 = math.exp %9 : vector<16x128xf32>
    %cst_6 = arith.constant 0.000000e+00 : f32
    %11 = vector.broadcast %cst_6 : f32 to vector<16x128xf32>
    %12 = arith.cmpf oge, %4, %11 : vector<16x128xf32>
    %cst_7 = arith.constant 1.000000e+00 : f32
    %13 = vector.broadcast %cst_7 : f32 to vector<16x128xf32>
    %14 = arith.select %12, %13, %10 : vector<16x128xi1>, vector<16x128xf32>
    %cst_8 = arith.constant 1.000000e+00 : f32
    %15 = vector.broadcast %cst_8 : f32 to vector<16x128xf32>
    %16 = arith.addf %15, %10 : vector<16x128xf32>
    %17 = arith.divf %14, %16 : vector<16x128xf32>
    %cst_9 = arith.constant 0.000000e+00 : f32
    %18 = vector.broadcast %cst_9 : f32 to vector<16x128xf32>
    %19 = arith.maximumf %4, %18 : vector<16x128xf32>
    %20 = arith.mulf %4, %6 : vector<16x128xf32>
    %21 = arith.subf %19, %20 : vector<16x128xf32>
    %22 = math.log1p %10 : vector<16x128xf32>
    %23 = arith.addf %21, %22 : vector<16x128xf32>
    %c0_10 = arith.constant 0 : index
    %c0_11 = arith.constant 0 : index
    %c0_12 = arith.constant 0 : index
    %c0_13 = arith.constant 0 : index
    %24 = vector.load %arg4[%c0_10, %c0_11, %c0_12, %c0_13] : memref<1x5x8x128xf32, #tpu.memory_space<vmem>>, vector<1x1x8x128xf32>
    %25 = vector.shape_cast %24 : vector<1x1x8x128xf32> to vector<8x128xf32>
    %26 = vector.shape_cast %23 : vector<16x128xf32> to vector<2x8x128xf32>
    %cst_14 = arith.constant dense<0.000000e+00> : vector<8x128xf32>
    %27 = vector.multi_reduction <add>, %26, %cst_14 [0] : vector<2x8x128xf32> to vector<8x128xf32>
    %28 = arith.addf %25, %27 : vector<8x128xf32>
    %c0_15 = arith.constant 0 : index
    %c0_16 = arith.constant 0 : index
    %c0_17 = arith.constant 0 : index
    %c0_18 = arith.constant 0 : index
    %29 = vector.load %arg4[%c0_15, %c0_16, %c0_17, %c0_18] : memref<1x5x8x128xf32, #tpu.memory_space<vmem>>, vector<1x1x8x128xf32>
    %30 = vector.shape_cast %29 : vector<1x1x8x128xf32> to vector<8x128xf32>
    %31 = vector.shape_cast %28 : vector<8x128xf32> to vector<1x1x8x128xf32>
    tpu.vector_store %arg4[%c0_15, %c0_16, %c0_17, %c0_18], %31 {strides = array<i32>} : memref<1x5x8x128xf32, #tpu.memory_space<vmem>>, vector<1x1x8x128xf32>,
    %c0_19 = arith.constant 0 : index
    %c1 = arith.constant 1 : index
    %c0_20 = arith.constant 0 : index
    %c0_21 = arith.constant 0 : index
    %32 = vector.load %arg4[%c0_19, %c1, %c0_20, %c0_21] : memref<1x5x8x128xf32, #tpu.memory_space<vmem>>, vector<1x1x8x128xf32>
    %33 = vector.shape_cast %32 : vector<1x1x8x128xf32> to vector<8x128xf32>
    %34 = arith.mulf %6, %23 : vector<16x128xf32>
    %35 = vector.shape_cast %34 : vector<16x128xf32> to vector<2x8x128xf32>
    %cst_22 = arith.constant dense<0.000000e+00> : vector<8x128xf32>
    %36 = vector.multi_reduction <add>, %35, %cst_22 [0] : vector<2x8x128xf32> to vector<8x128xf32>
    %37 = arith.addf %33, %36 : vector<8x128xf32>
    %c0_23 = arith.constant 0 : index
    %c1_24 = arith.constant 1 : index
    %c0_25 = arith.constant 0 : index
    %c0_26 = arith.constant 0 : index
    %38 = vector.load %arg4[%c0_23, %c1_24, %c0_25, %c0_26] : memref<1x5x8x128xf32, #tpu.memory_space<vmem>>, vector<1x1x8x128xf32>
    %39 = vector.shape_cast %38 : vector<1x1x8x128xf32> to vector<8x128xf32>
    %40 = vector.shape_cast %37 : vector<8x128xf32> to vector<1x1x8x128xf32>
    tpu.vector_store %arg4[%c0_23, %c1_24, %c0_25, %c0_26], %40 {strides = array<i32>} : memref<1x5x8x128xf32, #tpu.memory_space<vmem>>, vector<1x1x8x128xf32>,
    %c0_27 = arith.constant 0 : index
    %c2 = arith.constant 2 : index
    %c0_28 = arith.constant 0 : index
    %c0_29 = arith.constant 0 : index
    %41 = vector.load %arg4[%c0_27, %c2, %c0_28, %c0_29] : memref<1x5x8x128xf32, #tpu.memory_space<vmem>>, vector<1x1x8x128xf32>
    %42 = vector.shape_cast %41 : vector<1x1x8x128xf32> to vector<8x128xf32>
    %43 = arith.mulf %17, %6 : vector<16x128xf32>
    %44 = vector.shape_cast %43 : vector<16x128xf32> to vector<2x8x128xf32>
    %cst_30 = arith.constant dense<0.000000e+00> : vector<8x128xf32>
    %45 = vector.multi_reduction <add>, %44, %cst_30 [0] : vector<2x8x128xf32> to vector<8x128xf32>
    %46 = arith.addf %42, %45 : vector<8x128xf32>
    %c0_31 = arith.constant 0 : index
    %c2_32 = arith.constant 2 : index
    %c0_33 = arith.constant 0 : index
    %c0_34 = arith.constant 0 : index
    %47 = vector.load %arg4[%c0_31, %c2_32, %c0_33, %c0_34] : memref<1x5x8x128xf32, #tpu.memory_space<vmem>>, vector<1x1x8x128xf32>
    %48 = vector.shape_cast %47 : vector<1x1x8x128xf32> to vector<8x128xf32>
    %49 = vector.shape_cast %46 : vector<8x128xf32> to vector<1x1x8x128xf32>
    tpu.vector_store %arg4[%c0_31, %c2_32, %c0_33, %c0_34], %49 {strides = array<i32>} : memref<1x5x8x128xf32, #tpu.memory_space<vmem>>, vector<1x1x8x128xf32>,
    %c0_35 = arith.constant 0 : index
    %c3 = arith.constant 3 : index
    %c0_36 = arith.constant 0 : index
    %c0_37 = arith.constant 0 : index
    %50 = vector.load %arg4[%c0_35, %c3, %c0_36, %c0_37] : memref<1x5x8x128xf32, #tpu.memory_space<vmem>>, vector<1x1x8x128xf32>
    %51 = vector.shape_cast %50 : vector<1x1x8x128xf32> to vector<8x128xf32>
    %52 = vector.shape_cast %17 : vector<16x128xf32> to vector<2x8x128xf32>
    %cst_38 = arith.constant dense<0.000000e+00> : vector<8x128xf32>
    %53 = vector.multi_reduction <add>, %52, %cst_38 [0] : vector<2x8x128xf32> to vector<8x128xf32>
    %54 = arith.addf %51, %53 : vector<8x128xf32>
    %c0_39 = arith.constant 0 : index
    %c3_40 = arith.constant 3 : index
    %c0_41 = arith.constant 0 : index
    %c0_42 = arith.constant 0 : index
    %55 = vector.load %arg4[%c0_39, %c3_40, %c0_41, %c0_42] : memref<1x5x8x128xf32, #tpu.memory_space<vmem>>, vector<1x1x8x128xf32>
    %56 = vector.shape_cast %55 : vector<1x1x8x128xf32> to vector<8x128xf32>
    %57 = vector.shape_cast %54 : vector<8x128xf32> to vector<1x1x8x128xf32>
    tpu.vector_store %arg4[%c0_39, %c3_40, %c0_41, %c0_42], %57 {strides = array<i32>} : memref<1x5x8x128xf32, #tpu.memory_space<vmem>>, vector<1x1x8x128xf32>,
    %c0_43 = arith.constant 0 : index
    %c4 = arith.constant 4 : index
    %c0_44 = arith.constant 0 : index
    %c0_45 = arith.constant 0 : index
    %58 = vector.load %arg4[%c0_43, %c4, %c0_44, %c0_45] : memref<1x5x8x128xf32, #tpu.memory_space<vmem>>, vector<1x1x8x128xf32>
    %59 = vector.shape_cast %58 : vector<1x1x8x128xf32> to vector<8x128xf32>
    %60 = vector.shape_cast %6 : vector<16x128xf32> to vector<2x8x128xf32>
    %cst_46 = arith.constant dense<0.000000e+00> : vector<8x128xf32>
    %61 = vector.multi_reduction <add>, %60, %cst_46 [0] : vector<2x8x128xf32> to vector<8x128xf32>
    %62 = arith.addf %59, %61 : vector<8x128xf32>
    %c0_47 = arith.constant 0 : index
    %c4_48 = arith.constant 4 : index
    %c0_49 = arith.constant 0 : index
    %c0_50 = arith.constant 0 : index
    %63 = vector.load %arg4[%c0_47, %c4_48, %c0_49, %c0_50] : memref<1x5x8x128xf32, #tpu.memory_space<vmem>>, vector<1x1x8x128xf32>
    %64 = vector.shape_cast %63 : vector<1x1x8x128xf32> to vector<8x128xf32>
    %65 = vector.shape_cast %62 : vector<8x128xf32> to vector<1x1x8x128xf32>
    tpu.vector_store %arg4[%c0_47, %c4_48, %c0_49, %c0_50], %65 {strides = array<i32>} : memref<1x5x8x128xf32, #tpu.memory_space<vmem>>, vector<1x1x8x128xf32>,
    return
  }
  func.func @transform_0(%arg0: i32, %arg1: i32) -> (i32, i32, i32) {
    %c0_i32 = arith.constant 0 : i32
    %c0_i32_0 = arith.constant 0 : i32
    return %arg0, %arg1, %c0_i32 : i32, i32, i32
  }
  func.func @transform_1(%arg0: i32, %arg1: i32) -> (i32, i32, i32) {
    %c0_i32 = arith.constant 0 : i32
    %c0_i32_0 = arith.constant 0 : i32
    return %arg0, %arg1, %c0_i32 : i32, i32, i32
  }
  func.func @transform_2(%arg0: i32, %arg1: i32) -> (i32, i32, i32, i32) {
    %c0_i32 = arith.constant 0 : i32
    %c0_i32_0 = arith.constant 0 : i32
    %c0_i32_1 = arith.constant 0 : i32
    %c0_i32_2 = arith.constant 0 : i32
    return %arg0, %c0_i32, %c0_i32_0, %c0_i32_1 : i32, i32, i32, i32
  }
}

</mosaic_0001>

<llo_original>
// kernel: weighted_bce_dice_loss.1
$region0: #{weighted_bce_dice_loss.1}
  #allocation0 [shape = 'u32[]', space=smem, size = 0x4, offset = 0x4, fixed_abs, tag = 'smem constant byte address 0x4 - core index']
  #allocation1 [shape = 'u32[144,128]{1,0:T(1,128)}', space=vmem, size = 0x12000, scoped, tag = 'internal scratch']
  %s0 = inlined_call_operand.vmem [shape: f32[2,16,128], index: 0, kind: input, shape index: {}]
  %s1 = inlined_call_operand.vmem [shape: f32[2,16,128], index: 1, kind: input, shape index: {}]
  %s2 = inlined_call_operand.vmem [shape: f32[2,5,8,128], index: 2, kind: output, shape index: {}]
  %s3 = sld [smem:[#allocation0]]
  $region45: #{weighted_bce_dice_loss.1} parent=0
    _
  %s5 = ssub.s32 1, %s3
  %s6 = scalar_select 0, %s5, %s3
  loop: start=0, step=1, limit=4
  $region2: #{weighted_bce_dice_loss.1} parent=0 // loop_pre_header
    _
  $region3: #{weighted_bce_dice_loss.1} parent=0 // loop_header
    %s8 = sphi 0, %s12
    %p9 = scmp.ge.s32.totalorder %s8, 4
    %s15 = sphi 0, %s27
    %s16 = sphi 0, %s23
    %s17 = sphi 0, %s15
    %s18 = sphi 0, %s16
    %s19 = sphi 0, %s17
    %s20 = sphi 0, %s18
    %s32 = sphi 0, %s34
    %s35 = sphi 0, %s32
    %s36 = sphi 0, %s35
    %s52 = sphi 0, %s36
    %s60 = sphi 0, %s62
    %s63 = sphi 0, %s60
    %s64 = sphi 0, %s63
    %s80 = sphi 0, %s64
    %s86 = sphi 0, %s88
    %s89 = sphi 0, %s86
    %s90 = sphi 0, %s89
    %s106 = sphi 0, %s90
  $region4: #{weighted_bce_dice_loss.1} parent=0 // loop_header_branch
    %11 = sbr.rel (%p9) target = $region8
  $region5: #{weighted_bce_dice_loss.1} parent=0 // loop_body
    %s13 = ssub.s32 %s8, 1
    %s14 = ssub.s32 %s8, 2
    %s21 = sadd.s32 1, %s16
    %p22 = scmp.ge.s32.totalorder %s21, 1
    %s23 = scalar_select %p22, 0, %s21
    %s24 = sadd.s32 1, %s15
    %s25 = scalar_select %p22, %s24, %s15
    %p26 = scmp.ge.s32.totalorder %s25, 2
    %s27 = scalar_select %p26, 0, %s25
    %s28 = ssub.s32 %s15, %s27
    %s29 = ssub.s32 %s16, %s23
    %s30 = sor.u32 %s28, %s29
    %p31 = scmp.eq.s32.totalorder %s30, 0
    %s33 = sadd.s32 %s32, 1
    %s34 = scalar_select %p31, %s32, %s33
    %p37 = pneg %p31
    %p38 = scmp.eq.s32.totalorder %s8, 1
    %p39 = por %p37, %p38
    %p40 = scmp.ne.s32.totalorder %s32, %s35
    %p41 = scmp.eq.s32.totalorder %s8, 0
    %p42 = por %p40, %p41
    %p43 = scmp.ne.s32.totalorder %s32, %s35
    %p44 = scmp.eq.s32.totalorder %s13, 1
    %p45 = por %p43, %p44
    %p46 = scmp.ne.s32.totalorder %s35, %s36
    %p47 = scmp.eq.s32.totalorder %s13, 0
    %p48 = por %p46, %p47
    %p49 = scmp.ne.s32.totalorder %s35, %s36
    %p50 = scmp.eq.s32.totalorder %s14, 1
    %p51 = por %p49, %p50
    %p53 = scmp.ne.s32.totalorder %s36, %s52
    %p54 = scmp.eq.s32.totalorder %s14, 0
    %p55 = por %p53, %p54
    %s56 = ssub.s32 %s15, %s27
    %s57 = ssub.s32 %s16, %s23
    %s58 = sor.u32 %s56, %s57
    %p59 = scmp.eq.s32.totalorder %s58, 0
    %s61 = sadd.s32 %s60, 1
    %s62 = scalar_select %p59, %s60, %s61
    %p65 = pneg %p59
    %p66 = scmp.eq.s32.totalorder %s8, 1
    %p67 = por %p65, %p66
    %p68 = scmp.ne.s32.totalorder %s60, %s63
    %p69 = scmp.eq.s32.totalorder %s8, 0
    %p70 = por %p68, %p69
    %p71 = scmp.ne.s32.totalorder %s60, %s63
    %p72 = scmp.eq.s32.totalorder %s13, 1
    %p73 = por %p71, %p72
    %p74 = scmp.ne.s32.totalorder %s63, %s64
    %p75 = scmp.eq.s32.totalorder %s13, 0
    %p76 = por %p74, %p75
    %p77 = scmp.ne.s32.totalorder %s63, %s64
    %p78 = scmp.eq.s32.totalorder %s14, 1
    %p79 = por %p77, %p78
    %p81 = scmp.ne.s32.totalorder %s64, %s80
    %p82 = scmp.eq.s32.totalorder %s14, 0
    %p83 = por %p81, %p82
    %s84 = ssub.s32 %s15, %s27
    %p85 = scmp.eq.s32.totalorder %s84, 0
    %s87 = sadd.s32 %s86, 1
    %s88 = scalar_select %p85, %s86, %s87
    %p91 = pneg %p85
    %p92 = scmp.eq.s32.totalorder %s8, 1
    %p93 = por %p91, %p92
    %p94 = scmp.ne.s32.totalorder %s86, %s89
    %p95 = scmp.eq.s32.totalorder %s8, 0
    %p96 = por %p94, %p95
    %p97 = scmp.ne.s32.totalorder %s86, %s89
    %p98 = scmp.eq.s32.totalorder %s13, 1
    %p99 = por %p97, %p98
    %p100 = scmp.ne.s32.totalorder %s89, %s90
    %p101 = scmp.eq.s32.totalorder %s13, 0
    %p102 = por %p100, %p101
    %p103 = scmp.ne.s32.totalorder %s89, %s90
    %p104 = scmp.eq.s32.totalorder %s14, 1
    %p105 = por %p103, %p104
    %p107 = scmp.ne.s32.totalorder %s90, %s106
    %p108 = scmp.eq.s32.totalorder %s14, 0
    %p109 = por %p107, %p108
    %p110 = scmp.le.s32.totalorder 1, %s8
    %p111 = scmp.lt.s32.totalorder %s8, 3
    %p112 = pnand %p110, %p111
    %p113 = pneg %p112
    // Predicated region
    $region9: #{weighted_bce_dice_loss.1} parent=5 // pred_check
      _
    $region10: #{weighted_bce_dice_loss.1} parent=5 // pred_check_branch
      %115 = sbr.rel (%p112) target = $region12
    $region11: #{weighted_bce_dice_loss.1} parent=5 // pred_region
      %s116 = ssub.s32 %s8, 1
    $region12: #{weighted_bce_dice_loss.1} parent=5 // pred_fallthru
      _
    %p117 = scmp.lt.s32.totalorder %s8, 2
    // Predicated region
    $region13: #{weighted_bce_dice_loss.1} parent=5 // pred_check
      %p118 = pneg %p117
    $region14: #{weighted_bce_dice_loss.1} parent=5 // pred_check_branch
      %120 = sbr.rel (%p118) target = $region16
    $region15: #{weighted_bce_dice_loss.1} parent=5 // pred_region
      // Predicated region
      $region17: #{weighted_bce_dice_loss.1} parent=15 // pred_check
        %p121 = pneg %p42
      $region18: #{weighted_bce_dice_loss.1} parent=15 // pred_check_branch
        %123 = sbr.rel (%p121) target = $region20
      $region19: #{weighted_bce_dice_loss.1} parent=15 // pred_region
        %s124 = smul.u32 2, %s16
        %p125 = scmp.lt.s32.totalorder %s15, 1
        %s126 = scalar_select %p125, %s15, 1
        %p127 = scmp.lt.s32.totalorder %s124, 1
        %s128 = scalar_select %p127, %s124, 1
        %s129 = smul.addr %s126, 2
        %s130 = sadd.s32 %s128, %s129
        %s131 = smul.addr %s130, 8
        %s132 = scalar_lea.vmem %s0, %s131
        %s133 = smul.u32 2, %s16
      $region20: #{weighted_bce_dice_loss.1} parent=15 // pred_fallthru
        _
      // Predicated region
      $region21: #{weighted_bce_dice_loss.1} parent=15 // pred_check
        %p134 = pneg %p70
      $region22: #{weighted_bce_dice_loss.1} parent=15 // pred_check_branch
        %136 = sbr.rel (%p134) target = $region24
      $region23: #{weighted_bce_dice_loss.1} parent=15 // pred_region
        %s137 = smul.u32 2, %s16
        %p138 = scmp.lt.s32.totalorder %s15, 1
        %s139 = scalar_select %p138, %s15, 1
        %p140 = scmp.lt.s32.totalorder %s137, 1
        %s141 = scalar_select %p140, %s137, 1
        %s142 = smul.addr %s139, 2
        %s143 = sadd.s32 %s141, %s142
        %s144 = smul.addr %s143, 8
        %s145 = scalar_lea.vmem %s1, %s144
        %s146 = smul.u32 2, %s16
      $region24: #{weighted_bce_dice_loss.1} parent=15 // pred_fallthru
        _
    $region16: #{weighted_bce_dice_loss.1} parent=5 // pred_fallthru
      _
    %p147 = scmp.le.s32.totalorder 1, %s8
    %p148 = scmp.lt.s32.totalorder %s8, 3
    %p149 = pnand %p147, %p148
    %p150 = pneg %p149
    // Predicated region
    $region25: #{weighted_bce_dice_loss.1} parent=5 // pred_check
      _
    $region26: #{weighted_bce_dice_loss.1} parent=5 // pred_check_branch
      %152 = sbr.rel (%p149) target = $region28
    $region27: #{weighted_bce_dice_loss.1} parent=5 // pred_region
      %s153 = ssub.s32 %s8, 1
      %s154 = smul.u32 2, %s18
      %p155 = scmp.lt.s32.totalorder %s17, 1
      %s156 = scalar_select %p155, %s17, 1
      %p157 = scmp.lt.s32.totalorder %s154, 1
      %s158 = scalar_select %p157, %s154, 1
      %s159 = smul.addr %s156, 2
      %s160 = sadd.s32 %s158, %s159
      %s161 = smul.addr %s160, 8
      %s162 = scalar_lea.vmem %s0, %s161
      %p163 = pneg %p48
      %p164 = pneg %p45
      %s165 = smul.u32 2, %s18
      %p166 = scmp.lt.s32.totalorder %s17, 1
      %s167 = scalar_select %p166, %s17, 1
      %p168 = scmp.lt.s32.totalorder %s165, 1
      %s169 = scalar_select %p168, %s165, 1
      %s170 = smul.addr %s167, 2
      %s171 = sadd.s32 %s169, %s170
      %s172 = smul.addr %s171, 8
      %s173 = scalar_lea.vmem %s1, %s172
      %p174 = pneg %p76
      %p175 = pneg %p73
      %p176 = pneg %p102
      %p177 = pneg %p99
      %p178 = scmp.lt.s32.totalorder %s17, 1
      %s179 = scalar_select %p178, %s17, 1
      %s180 = smul.addr %s179, 5
      %s181 = smul.addr %s180, 8
      %s182 = scalar_lea.vmem %s2, %s181
      %s183 = smul.u32 2, %s18
      %p184 = scmp.lt.s32.totalorder %s17, 1
      %s185 = scalar_select %p184, %s17, 1
      %p186 = scmp.lt.s32.totalorder %s183, 1
      %s187 = scalar_select %p186, %s183, 1
      %s188 = smul.addr %s185, 2
      %s189 = sadd.s32 %s187, %s188
      %s190 = smul.addr %s189, 8
      %s191 = scalar_lea.vmem %s0, %s190
      %s192 = smul.u32 2, %s18
      %s193 = smul.u32 2, %s18
      %p194 = scmp.lt.s32.totalorder %s17, 1
      %s195 = scalar_select %p194, %s17, 1
      %p196 = scmp.lt.s32.totalorder %s193, 1
      %s197 = scalar_select %p196, %s193, 1
      %s198 = smul.addr %s195, 2
      %s199 = sadd.s32 %s197, %s198
      %s200 = smul.addr %s199, 8
      %s201 = scalar_lea.vmem %s1, %s200
      %s202 = smul.u32 2, %s18
      %p203 = scmp.lt.s32.totalorder %s17, 1
      %s204 = scalar_select %p203, %s17, 1
      %s205 = smul.addr %s204, 5
      %s206 = smul.addr %s205, 8
      %s207 = scalar_lea.vmem %s2, %s206
      %p208 = scmp.eq.s32.totalorder %s18, 0
      // Predicated region
      $region29: #{weighted_bce_dice_loss.1} parent=27 // pred_check
        %p209 = pneg %p208
      $region30: #{weighted_bce_dice_loss.1} parent=27 // pred_check_branch
        %211 = sbr.rel (%p209) target = $region32
      $region31: #{weighted_bce_dice_loss.1} parent=27 // pred_region
        %212 = vst [vmem:[%s207] sm:$0xff] 0.0
        %213 = vst [vmem:[%s207 + $0x8] sm:$0xff] 0.0
        %214 = vst [vmem:[%s207 + $0x10] sm:$0xff] 0.0
        %215 = vst [vmem:[%s207 + $0x18] sm:$0xff] 0.0
        %216 = vst [vmem:[%s207 + $0x20] sm:$0xff] 0.0
      $region32: #{weighted_bce_dice_loss.1} parent=27 // pred_fallthru
        _
      %v217 = vld [vmem:[%s191] sm:$0xff]
      %v218 = vld [vmem:[%s191 + $0x8] sm:$0xff]
      %v219 = vld [vmem:[%s201] sm:$0xff]
      %v220 = vld [vmem:[%s201 + $0x8] sm:$0xff]
      %v221 = vand.u32 2147483647, %v217
      %v222 = vand.u32 2147483647, %v218
      %v223 = vsub.f32 0.0, %v221
      %v224 = vsub.f32 0.0, %v222
      %v225 = vmul.f32 %v223, 1.442695
      %v226 = vpow.pop %v225
      %v227 = vmul.f32 %v224, 1.442695
      %v228 = vpow.pop %v227
      %vm229 = vcmp.ge.f32.partialorder %v217, 0.0
      %vm230 = vcmp.ge.f32.partialorder %v218, 0.0
      %v231 = vsel %vm229, 1.0, %v226
      %v232 = vsel %vm230, 1.0, %v228
      %v233 = vadd.f32 %v226, 1.0
      %v234 = vadd.f32 %v228, 1.0
      %v235 = vrcp.pop %v233
      %v236 = vmul.f32 %v231, %v235
      %v237 = vrcp.pop %v234
      %v238 = vmul.f32 %v232, %v237
      %v239 = vmax.f32 %v217, 0.0
      %v240 = vmax.f32 %v218, 0.0
      %v241 = vmul.f32 %v217, %v219
      %v242 = vmul.f32 %v218, %v220
      %v243 = vsub.f32 %v239, %v241
      %v244 = vsub.f32 %v240, %v242
      %v245 = vadd.f32 %v226, 1.0
      %v246 = vlog2.pop %v245
      %v247 = vmul.f32 %v246, 0.6931472
      %v248 = vmul.f32 -0.5, %v226
      %v249 = vadd.f32 %v248, 1.0
      %v250 = vmul.f32 %v249, %v226
      %v251 = vand.u32 2147483647, %v226
      %vm252 = vcmp.lt.f32.partialorder %v251, 0.0004427343
      %v253 = vsel %vm252, %v250, %v247
      %v254 = vadd.f32 %v228, 1.0
      %v255 = vlog2.pop %v254
      %v256 = vmul.f32 %v255, 0.6931472
      %v257 = vmul.f32 -0.5, %v228
      %v258 = vadd.f32 %v257, 1.0
      %v259 = vmul.f32 %v258, %v228
      %v260 = vand.u32 2147483647, %v228
      %vm261 = vcmp.lt.f32.partialorder %v260, 0.0004427343
      %v262 = vsel %vm261, %v259, %v256
      %v263 = vadd.f32 %v243, %v253
      %v264 = vadd.f32 %v244, %v262
      %v265 = vld [vmem:[%s207] sm:$0xff]
      %v266 = vadd.f32 %v263, %v264
      %v267 = vadd.f32 %v265, %v266
      %268 = vst [vmem:[%s207] sm:$0xff] %v267
      %s269 = scalar_lea.vmem %s207, 8
      %v270 = vld [vmem:[%s269] sm:$0xff]
      %v271 = vmul.f32 %v219, %v263
      %v272 = vmul.f32 %v220, %v264
      %v273 = vadd.f32 %v271, %v272
      %v274 = vadd.f32 %v270, %v273
      %275 = vst [vmem:[%s269] sm:$0xff] %v274
      %s276 = scalar_lea.vmem %s207, 16
      %v277 = vld [vmem:[%s276] sm:$0xff]
      %v278 = vmul.f32 %v236, %v219
      %v279 = vmul.f32 %v238, %v220
      %v280 = vadd.f32 %v278, %v279
      %v281 = vadd.f32 %v277, %v280
      %282 = vst [vmem:[%s276] sm:$0xff] %v281
      %s283 = scalar_lea.vmem %s207, 24
      %v284 = vld [vmem:[%s283] sm:$0xff]
      %v285 = vadd.f32 %v236, %v238
      %v286 = vadd.f32 %v284, %v285
      %287 = vst [vmem:[%s283] sm:$0xff] %v286
      %s288 = scalar_lea.vmem %s207, 32
      %v289 = vld [vmem:[%s288] sm:$0xff]
      %v290 = vadd.f32 %v219, %v220
      %v291 = vadd.f32 %v289, %v290
      %292 = vst [vmem:[%s288] sm:$0xff] %v291
      %p293 = scmp.lt.s32.totalorder %s17, 1
      %s294 = scalar_select %p293, %s17, 1
      %s295 = smul.addr %s294, 5
      %s296 = smul.addr %s295, 8
      %s297 = scalar_lea.vmem %s2, %s296
      // Predicated region
      $region33: #{weighted_bce_dice_loss.1} parent=27 // pred_check
        %p298 = pneg %p99
      $region34: #{weighted_bce_dice_loss.1} parent=27 // pred_check_branch
        %300 = sbr.rel (%p298) target = $region36
      $region35: #{weighted_bce_dice_loss.1} parent=27 // pred_region
        _
      $region36: #{weighted_bce_dice_loss.1} parent=27 // pred_fallthru
        _
    $region28: #{weighted_bce_dice_loss.1} parent=5 // pred_fallthru
      _
    %p301 = scmp.le.s32.totalorder 2, %s8
    // Predicated region
    $region37: #{weighted_bce_dice_loss.1} parent=5 // pred_check
      %p302 = pneg %p301
    $region38: #{weighted_bce_dice_loss.1} parent=5 // pred_check_branch
      %304 = sbr.rel (%p302) target = $region40
    $region39: #{weighted_bce_dice_loss.1} parent=5 // pred_region
      %s305 = ssub.s32 %s8, 2
      // Predicated region
      $region41: #{weighted_bce_dice_loss.1} parent=39 // pred_check
        %p306 = pneg %p105
      $region42: #{weighted_bce_dice_loss.1} parent=39 // pred_check_branch
        %308 = sbr.rel (%p306) target = $region44
      $region43: #{weighted_bce_dice_loss.1} parent=39 // pred_region
        %p309 = scmp.lt.s32.totalorder %s19, 1
        %s310 = scalar_select %p309, %s19, 1
        %s311 = smul.addr %s310, 5
        %s312 = smul.addr %s311, 8
        %s313 = scalar_lea.vmem %s2, %s312
      $region44: #{weighted_bce_dice_loss.1} parent=39 // pred_fallthru
        _
    $region40: #{weighted_bce_dice_loss.1} parent=5 // pred_fallthru
      _
  $region6: #{weighted_bce_dice_loss.1} parent=0 // loop_footer
    %s12 = sadd.s32 1, %s8
  $region7: #{weighted_bce_dice_loss.1} parent=0 // loop_footer_branch
    %7 = sbr.rel target = $region3
  $region8: #{weighted_bce_dice_loss.1} parent=0 // loop_exit
    _

</llo_original>
